<compile_context>
chip_gen: v7x
topology: tpu7x:2x2x1
jax: 0.10.0
libtpu: 0.0.40
codegen_flags: <defaults>
</compile_context>

<pallas_src>
import functools

import jax
import jax.numpy as jnp
from jax import lax
from jax.experimental import pallas as pl
from jax.experimental.pallas import tpu as pltpu


def _recover_kernel(x_ref, lr_ref, o_ref, *, upscale_factor, width, lowres_width):
    """One grid step processes bg low-res row groups (= bg * s high-res rows).

    x_ref  : (bg, s*W)  high-res rows, flattened per low-res row group
    lr_ref : (bg, w)    low-res density rows
    o_ref  : (bg, s*W)
    """
    s, W, w = upscale_factor, width, lowres_width

    lr = lr_ref[...]
    if lr.dtype == jnp.bfloat16:
        e_dtype = jnp.bfloat16          # exact 0/1 selection on the bf16 MXU path
    else:
        lr = lr.astype(jnp.float32)
        e_dtype = jnp.float32

    # 0/1 nearest-neighbour column-expansion matrix, built in-kernel
    # (iota + compare on the VPU; no HBM operand, no double buffering).
    col = lax.broadcasted_iota(jnp.int32, (w, W), 1)
    row = lax.broadcasted_iota(jnp.int32, (w, W), 0)
    ewt = ((col >= row * s) & (col < row * s + s)).astype(e_dtype)     # (w, W)

    # up[g, j] = lr[g, j // s]  (exact selection, accumulated in f32).
    up = jnp.dot(lr, ewt, preferred_element_type=jnp.float32)          # (bg, W)

    if W % 128 == 0:
        # 128-aligned slices: per-replica loop, unmasked lane-dense stores,
        # no full-block temporary.
        for p in range(s):  # s is small and static -> unrolled
            xp = x_ref[:, p * W:(p + 1) * W].astype(jnp.float32)
            o_ref[:, p * W:(p + 1) * W] = (xp * up).astype(o_ref.dtype)
    else:
        # Misaligned W: one full-lane-width unmasked store instead of s masked
        # partial stores crossing (8,128) tile boundaries.
        up_full = jnp.tile(up, (1, s))                                  # (bg, s*W)
        o_ref[...] = (x_ref[...].astype(jnp.float32) * up_full).astype(o_ref.dtype)


def _sublane_multiple(itemsize):
    """Sublane packing requirement for the narrowest dtype sharing the block."""
    return {4: 8, 2: 16, 1: 32}.get(int(itemsize), 8)


def _block_target_bytes():
    """Per-generation x-block byte target (2 / 4 / 8 MiB for v5e / v6e / v7x)."""
    try:
        kind = jax.devices()[0].device_kind.lower()
    except Exception:
        return 4 << 20
    if "v7" in kind:
        return 8 << 20
    if "v6" in kind:
        return 4 << 20
    if "v5e" in kind or "v5 lite" in kind or "v5lite" in kind:
        return 2 << 20
    return 4 << 20


def _pick_row_block(num_groups, row_bytes, sub_mult, target_bytes):
    """Largest multiple-of-sub_mult row-group count with block <= ~target_bytes.

    Never falls back to the full extent for awkward `num_groups`; the caller
    pads the row-group count up to a multiple of the returned block instead.
    """
    cap = max(1, target_bytes // max(1, row_bytes))
    bg = max(sub_mult, (cap // sub_mult) * sub_mult)
    g_pad_min = ((num_groups + sub_mult - 1) // sub_mult) * sub_mult
    return min(bg, g_pad_min)


def recover_from_density(x, lr_img, upscale_factor):
    """Equivalent of Recover_from_density(upscale_factor).forward(x, lr_img)."""
    N, C, H, W = x.shape
    n, c, h, w = lr_img.shape
    s = int(upscale_factor)
    assert (N, C) == (n, c)
    assert H == h * s and W == w * s

    out_dtype = jnp.promote_types(x.dtype, lr_img.dtype)
    G = N * C * h          # number of low-res row groups
    L = s * W              # high-res elements per group (lane axis)

    x_item = x.dtype.itemsize
    lr_item = lr_img.dtype.itemsize
    out_item = jnp.dtype(out_dtype).itemsize

    # Free (contiguous) views — no data movement.
    xf = x.reshape(G, L)
    lf = lr_img.reshape(G, w)

    # Dtype-aware block sizing; sublane multiple follows the narrowest dtype.
    sub_mult = _sublane_multiple(min(x_item, lr_item, out_item))
    row_bytes = L * max(x_item, out_item)
    bg = _pick_row_block(G, row_bytes, sub_mult, _block_target_bytes())

    # Pad the row-group axis up to a multiple of bg (never a full-extent
    # fallback); extra rows are zeros and are sliced off the output.
    G_pad = ((G + bg - 1) // bg) * bg
    if G_pad != G:
        xf = jnp.pad(xf, ((0, G_pad - G), (0, 0)))
        lf = jnp.pad(lf, ((0, G_pad - G), (0, 0)))
    grid = (G_pad // bg,)

    # VMEM budget: 2 bufs each for x / out / lr blocks + f32 temps + margin,
    # capped with headroom under v7x's 64 MiB physical VMEM.
    blk_bytes = bg * L * (x_item + out_item) + bg * w * lr_item
    scratch_bytes = bg * L * 4 + bg * W * 4 + w * W * 4
    vmem_limit = int(min(max(2 * blk_bytes + scratch_bytes + (4 << 20), 32 << 20),
                         48 << 20))

    cost = pl.CostEstimate(
        flops=2 * G_pad * w * W + G_pad * L,
        transcendentals=0,
        bytes_accessed=G_pad * L * (x_item + out_item) + G_pad * w * lr_item,
    )

    kernel = functools.partial(
        _recover_kernel, upscale_factor=s, width=W, lowres_width=w)

    out = pl.pallas_call(
        kernel,
        out_shape=jax.ShapeDtypeStruct((G_pad, L), out_dtype),
        grid_spec=pltpu.PrefetchScalarGridSpec(
            num_scalar_prefetch=0,
            grid=grid,
            in_specs=[
                pl.BlockSpec((bg, L), lambda i: (i, 0)),
                pl.BlockSpec((bg, w), lambda i: (i, 0)),
            ],
            out_specs=pl.BlockSpec((bg, L), lambda i: (i, 0)),
        ),
        compiler_params=pltpu.CompilerParams(
            dimension_semantics=("parallel",),   # independent steps -> megacore OK
            vmem_limit_bytes=vmem_limit,
        ),
        cost_estimate=cost,
    )(xf, lf)

    return out[:G].reshape(N, C, H, W)


if __name__ == "__main__":
    key = jax.random.PRNGKey(0)
    k1, k2 = jax.random.split(key)

    upscale = 2
    N, C, h, w = 2, 4, 8, 8
    H, W = h * upscale, w * upscale

    x = jax.random.normal(k1, (N, C, H, W), dtype=jnp.float32)
    lr = jax.random.normal(k2, (N, C, h, w), dtype=jnp.float32)

    out = jax.block_until_ready(recover_from_density(x, lr, upscale))

    # Pure-JAX reference: nearest upsample then multiply (matches torch semantics).
    up_ref = jnp.repeat(jnp.repeat(lr, upscale, axis=2), upscale, axis=3)
    ref = x * up_ref
    assert out.shape == ref.shape and out.dtype == ref.dtype
    assert jnp.allclose(out, ref, atol=1e-6, rtol=1e-6)

    print("KERNEL_OK")
</pallas_src>

<mosaic_0001>
module attributes {stable_mosaic.version = 11 : i64} {
  func.func @_recover_kernel(%arg0: i32, %arg1: memref<64x32xf32, #tpu.memory_space<vmem>>, %arg2: memref<64x8xf32, #tpu.memory_space<vmem>>, %arg3: memref<64x32xf32, #tpu.memory_space<vmem>>) attributes {dimension_semantics = [#tpu.dimension_semantics<parallel>], iteration_bounds = array<i64: 1>, scalar_prefetch = 0 : i64, scratch_operands = 0 : i64, tpu.core_type = #tpu.core_type<tc>, window_params = [{transform_indices = @transform_0, window_bounds = array<i64: 64, 32>}, {transform_indices = @transform_1, window_bounds = array<i64: 64, 8>}, {transform_indices = @transform_2, window_bounds = array<i64: 64, 32>}]} {
    %c0 = arith.constant 0 : index
    %c0_0 = arith.constant 0 : index
    %0 = vector.load %arg2[%c0, %c0_0] : memref<64x8xf32, #tpu.memory_space<vmem>>, vector<64x8xf32>
    %1 = tpu.iota {dimensions = array<i32: 1>} : vector<8x16xi32>
    %2 = tpu.iota {dimensions = array<i32: 0>} : vector<8x16xi32>
    %c2_i32 = arith.constant 2 : i32
    %3 = vector.broadcast %c2_i32 : i32 to vector<8x16xi32>
    %4 = arith.muli %2, %3 : vector<8x16xi32>
    %5 = arith.cmpi sge, %1, %4 : vector<8x16xi32>
    %c2_i32_1 = arith.constant 2 : i32
    %6 = vector.broadcast %c2_i32_1 : i32 to vector<8x16xi32>
    %7 = arith.muli %2, %6 : vector<8x16xi32>
    %c2_i32_2 = arith.constant 2 : i32
    %8 = vector.broadcast %c2_i32_2 : i32 to vector<8x16xi32>
    %9 = arith.addi %7, %8 : vector<8x16xi32>
    %10 = arith.cmpi slt, %1, %9 : vector<8x16xi32>
    %11 = arith.andi %5, %10 : vector<8x16xi1>
    %12 = arith.extui %11 : vector<8x16xi1> to vector<8x16xi32>
    %13 = arith.sitofp %12 : vector<8x16xi32> to vector<8x16xf32>
    %cst = arith.constant dense<0.000000e+00> : vector<64x16xf32>
    %14 = tpu.matmul %0, %13, %cst {dimension_numbers = #tpu.dot_dimension_numbers<[1], [0], [0], [1], [0, 0, 1, 1], [], []>} : vector<64x8xf32>, vector<8x16xf32>, vector<64x16xf32> -> vector<64x16xf32>
    %15 = tpu.concatenate %14, %14 in 1 : vector<64x16xf32>, vector<64x16xf32> -> vector<64x32xf32>
    %c0_3 = arith.constant 0 : index
    %c0_4 = arith.constant 0 : index
    %16 = vector.load %arg1[%c0_3, %c0_4] : memref<64x32xf32, #tpu.memory_space<vmem>>, vector<64x32xf32>
    %17 = arith.mulf %16, %15 : vector<64x32xf32>
    %c0_5 = arith.constant 0 : index
    %c0_6 = arith.constant 0 : index
    %18 = vector.load %arg3[%c0_5, %c0_6] : memref<64x32xf32, #tpu.memory_space<vmem>>, vector<64x32xf32>
    tpu.vector_store %arg3[%c0_5, %c0_6], %17 {strides = array<i32>} : memref<64x32xf32, #tpu.memory_space<vmem>>, vector<64x32xf32>,
    return
  }
  func.func @transform_0(%arg0: i32) -> (i32, i32) {
    %c0_i32 = arith.constant 0 : i32
    %c0_i32_0 = arith.constant 0 : i32
    return %arg0, %c0_i32 : i32, i32
  }
  func.func @transform_1(%arg0: i32) -> (i32, i32) {
    %c0_i32 = arith.constant 0 : i32
    %c0_i32_0 = arith.constant 0 : i32
    return %arg0, %c0_i32 : i32, i32
  }
  func.func @transform_2(%arg0: i32) -> (i32, i32) {
    %c0_i32 = arith.constant 0 : i32
    %c0_i32_0 = arith.constant 0 : i32
    return %arg0, %c0_i32 : i32, i32
  }
}

</mosaic_0001>

<llo_original>
// kernel: tpu_custom_call.1
$region0: #{tpu_custom_call.1}
  #allocation0 [shape = 'u32[]', space=smem, size = 0x4, offset = 0x4, fixed_abs, tag = 'smem constant byte address 0x4 - core index']
  #allocation1 [shape = 'u32[144,128]{1,0:T(1,128)}', space=vmem, size = 0x12000, scoped, tag = 'internal scratch']
  %s0 = inlined_call_operand.vmem [shape: f32[64,32], index: 0, kind: input, shape index: {}]
  %s1 = inlined_call_operand.vmem [shape: f32[64,8], index: 1, kind: input, shape index: {}]
  %s2 = inlined_call_operand.vmem [shape: f32[64,32], index: 2, kind: output, shape index: {}]
  %s3 = sld [smem:[#allocation0]]
  $region18: #{tpu_custom_call.1} parent=0
    _
  %s5 = ssub.s32 1, %s3
  %s6 = scalar_select 0, %s5, %s3
  // Predicated region
  $region2: #{tpu_custom_call.1} parent=0 // pred_check
    _
  $region3: #{tpu_custom_call.1} parent=0 // pred_check_branch
    %8 = sbr.rel (0) target = $region5
  $region4: #{tpu_custom_call.1} parent=0 // pred_region
    _
  $region5: #{tpu_custom_call.1} parent=0 // pred_fallthru
    _
  // Predicated region
  $region6: #{tpu_custom_call.1} parent=0 // pred_check
    _
  $region7: #{tpu_custom_call.1} parent=0 // pred_check_branch
    %10 = sbr.rel (0) target = $region9
  $region8: #{tpu_custom_call.1} parent=0 // pred_region
    _
  $region9: #{tpu_custom_call.1} parent=0 // pred_fallthru
    _
  %v11 = vld [vmem:[%s1] sm:$0xff]
  %v12 = vld [vmem:[%s1 + $0x8] sm:$0xff]
  %v13 = vld [vmem:[%s1 + $0x10] sm:$0xff]
  %v14 = vld [vmem:[%s1 + $0x18] sm:$0xff]
  %v15 = vld [vmem:[%s1 + $0x20] sm:$0xff]
  %v16 = vld [vmem:[%s1 + $0x28] sm:$0xff]
  %v17 = vld [vmem:[%s1 + $0x30] sm:$0xff]
  %v18 = vld [vmem:[%s1 + $0x38] sm:$0xff]
  %v19 = vlaneseq
  %v20 = vand.u32 %v19, 127
  %v21 = vlaneseq
  %v22 = vshrl.u32 %v21, 7
  %v23 = vmul.u32 %v22, 2
  %vm24 = vcmp.ge.s32.totalorder %v20, %v23
  %v25 = vadd.s32 %v23, 2
  %vm26 = vcmp.lt.s32.totalorder %v20, %v25
  %vm27 = vmand %vm24, %vm26
  %v28 = vsel %vm27, 1, 0
  %v29 = vcvt.s32.f32 %v28
  %vm30 = vcmask 64512
  %v32 = vsel %vm30, %v11, 0
  %v35 = vsel %vm30, %v12, 0
  %v38 = vsel %vm30, %v13, 0
  %v41 = vsel %vm30, %v14, 0
  %v44 = vsel %vm30, %v15, 0
  %v47 = vsel %vm30, %v16, 0
  %v50 = vsel %vm30, %v17, 0
  %v53 = vsel %vm30, %v18, 0
  %55 = vmatprep.subr.mxu0 0.0
  %56 = vmatpush1.msra.mxu0 %v29
  %57 = vmatprep.subr.mxu0 0.0
  %58 = vmatpush1.msra.mxu0 0.0
  %59 = vmatprep.subr.mxu0 0.0
  %60 = vmatpush1.msra.mxu0 0.0
  %61 = vmatprep.subr.mxu0 0.0
  %62 = vmatpush1.msra.mxu0 0.0
  %63 = vmatprep.subr.mxu0 0.0
  %64 = vmatpush1.msra.mxu0 0.0
  %65 = vmatprep.subr.mxu0 0.0
  %66 = vmatpush1.msra.mxu0 0.0
  %67 = vmatprep.subr.mxu0 0.0
  %68 = vmatpush1.msra.mxu0 0.0
  %69 = vmatprep.subr.mxu0 0.0
  %70 = vmatpush1.msra.mxu0 0.0
  %71 = vmatprep.subr.mxu0 0.0
  %72 = vmatpush1.msra.mxu0 0.0
  %73 = vmatprep.subr.mxu0 0.0
  %74 = vmatpush1.msra.mxu0 0.0
  %75 = vmatprep.subr.mxu0 0.0
  %76 = vmatpush1.msra.mxu0 0.0
  %77 = vmatprep.subr.mxu0 0.0
  %78 = vmatpush1.msra.mxu0 0.0
  %79 = vmatprep.subr.mxu0 0.0
  %80 = vmatpush1.msra.mxu0 0.0
  %81 = vmatprep.subr.mxu0 0.0
  %82 = vmatpush1.msra.mxu0 0.0
  %83 = vmatprep.subr.mxu0 0.0
  %84 = vmatpush1.msra.mxu0 0.0
  %85 = vmatprep.subr.mxu0 0.0
  %86 = vmatpush1.msra.mxu0 0.0
  %87 = vmatprep.subr.mxu0 0.0
  %88 = vmatpush1.msra.mxu0 0.0
  %89 = vmatprep.subr.mxu0 0.0
  %90 = vmatpush1.msra.mxu0 0.0
  %91 = vmatprep.subr.mxu0 0.0
  %92 = vmatpush1.msra.mxu0 0.0
  %93 = vmatprep.subr.mxu0 0.0
  %94 = vmatpush1.msra.mxu0 0.0
  %95 = vmatprep.subr.mxu0 0.0
  %96 = vmatpush1.msra.mxu0 0.0
  %97 = vmatprep.subr.mxu0 0.0
  %98 = vmatpush1.msra.mxu0 0.0
  %99 = vmatprep.subr.mxu0 0.0
  %100 = vmatpush1.msra.mxu0 0.0
  %101 = vmatprep.subr.mxu0 0.0
  %102 = vmatpush1.msra.mxu0 0.0
  %103 = vmatprep.subr.mxu0 0.0
  %104 = vmatpush1.msra.mxu0 0.0
  %105 = vmatprep.subr.mxu0 0.0
  %106 = vmatpush1.msra.mxu0 0.0
  %107 = vmatprep.subr.mxu0 0.0
  %108 = vmatpush1.msra.mxu0 0.0
  %109 = vmatprep.subr.mxu0 0.0
  %110 = vmatpush1.msra.mxu0 0.0
  %111 = vmatprep.subr.mxu0 0.0
  %112 = vmatpush1.msra.mxu0 0.0
  %113 = vmatprep.subr.mxu0 0.0
  %114 = vmatpush1.msra.mxu0 0.0
  %115 = vmatprep.subr.mxu0 0.0
  %116 = vmatpush1.msra.mxu0 0.0
  %117 = vmatprep.subr.mxu0 0.0
  %118 = vmatpush1.msra.mxu0 0.0
  %119 = vmatprep.mubr.f32.mxu0 0.0
  %120 = vmatmul.mubr.f32.gmra.mrb[0].mxu0 %v32
  %v121 = vpop.f32.mrb[0].mxu0
  %v122 = vadd.f32 0.0, %v121
  %v123 = vpop.f32.mrb[0].mxu0
  %124 = vmatprep.mubr.f32.mxu0 0.0
  %125 = vmatmul.mubr.f32.gmra.mrb[0].mxu0 %v35
  %v126 = vpop.f32.mrb[0].mxu0
  %v127 = vadd.f32 0.0, %v126
  %v128 = vpop.f32.mrb[0].mxu0
  %129 = vmatprep.mubr.f32.mxu0 0.0
  %130 = vmatmul.mubr.f32.gmra.mrb[0].mxu0 %v38
  %v131 = vpop.f32.mrb[0].mxu0
  %v132 = vadd.f32 0.0, %v131
  %v133 = vpop.f32.mrb[0].mxu0
  %134 = vmatprep.mubr.f32.mxu0 0.0
  %135 = vmatmul.mubr.f32.gmra.mrb[0].mxu0 %v41
  %v136 = vpop.f32.mrb[0].mxu0
  %v137 = vadd.f32 0.0, %v136
  %v138 = vpop.f32.mrb[0].mxu0
  %139 = vmatprep.mubr.f32.mxu0 0.0
  %140 = vmatmul.mubr.f32.gmra.mrb[0].mxu0 %v44
  %v141 = vpop.f32.mrb[0].mxu0
  %v142 = vadd.f32 0.0, %v141
  %v143 = vpop.f32.mrb[0].mxu0
  %144 = vmatprep.mubr.f32.mxu0 0.0
  %145 = vmatmul.mubr.f32.gmra.mrb[0].mxu0 %v47
  %v146 = vpop.f32.mrb[0].mxu0
  %v147 = vadd.f32 0.0, %v146
  %v148 = vpop.f32.mrb[0].mxu0
  %149 = vmatprep.mubr.f32.mxu0 0.0
  %150 = vmatmul.mubr.f32.gmra.mrb[0].mxu0 %v50
  %v151 = vpop.f32.mrb[0].mxu0
  %v152 = vadd.f32 0.0, %v151
  %v153 = vpop.f32.mrb[0].mxu0
  %154 = vmatprep.mubr.f32.mxu0 0.0
  %155 = vmatmul.mubr.f32.gmra.mrb[0].mxu0 %v53
  %v156 = vpop.f32.mrb[0].mxu0
  %v157 = vadd.f32 0.0, %v156
  %v158 = vpop.f32.mrb[0].mxu0
  %159 = vdwg.mxu0
  %168 = vrot.lane.b32.xlu0 %v122, 16
  %v169 = vpop.permute.xlu0 %168
  %170 = vrot.lane.b32.xlu0 %v127, 16
  %v171 = vpop.permute.xlu0 %170
  %172 = vrot.lane.b32.xlu0 %v132, 16
  %v173 = vpop.permute.xlu0 %172
  %174 = vrot.lane.b32.xlu0 %v137, 16
  %v175 = vpop.permute.xlu0 %174
  %176 = vrot.lane.b32.xlu0 %v142, 16
  %v177 = vpop.permute.xlu0 %176
  %178 = vrot.lane.b32.xlu0 %v147, 16
  %v179 = vpop.permute.xlu0 %178
  %180 = vrot.lane.b32.xlu0 %v152, 16
  %v181 = vpop.permute.xlu0 %180
  %182 = vrot.lane.b32.xlu0 %v157, 16
  %v183 = vpop.permute.xlu0 %182
  %vm192 = vcmask 130048
  %v193 = vsel %vm192, %v122, %v169
  %v194 = vsel %vm192, %v127, %v171
  %v195 = vsel %vm192, %v132, %v173
  %v196 = vsel %vm192, %v137, %v175
  %v197 = vsel %vm192, %v142, %v177
  %v198 = vsel %vm192, %v147, %v179
  %v199 = vsel %vm192, %v152, %v181
  %v200 = vsel %vm192, %v157, %v183
  %v201 = vld [vmem:[%s0] sm:$0xff]
  %v202 = vld [vmem:[%s0 + $0x8] sm:$0xff]
  %v203 = vld [vmem:[%s0 + $0x10] sm:$0xff]
  %v204 = vld [vmem:[%s0 + $0x18] sm:$0xff]
  %v205 = vld [vmem:[%s0 + $0x20] sm:$0xff]
  %v206 = vld [vmem:[%s0 + $0x28] sm:$0xff]
  %v207 = vld [vmem:[%s0 + $0x30] sm:$0xff]
  %v208 = vld [vmem:[%s0 + $0x38] sm:$0xff]
  %v209 = vmul.f32 %v201, %v193
  %v210 = vmul.f32 %v202, %v194
  %v211 = vmul.f32 %v203, %v195
  %v212 = vmul.f32 %v204, %v196
  %v213 = vmul.f32 %v205, %v197
  %v214 = vmul.f32 %v206, %v198
  %v215 = vmul.f32 %v207, %v199
  %v216 = vmul.f32 %v208, %v200
  %vm217 = vcmask 261120
  %218 = vst.msk [vmem:[%s2] sm:$0xff] %vm217, %v209
  %219 = vst.msk [vmem:[%s2 + $0x8] sm:$0xff] %vm217, %v210
  %220 = vst.msk [vmem:[%s2 + $0x10] sm:$0xff] %vm217, %v211
  %221 = vst.msk [vmem:[%s2 + $0x18] sm:$0xff] %vm217, %v212
  %222 = vst.msk [vmem:[%s2 + $0x20] sm:$0xff] %vm217, %v213
  %223 = vst.msk [vmem:[%s2 + $0x28] sm:$0xff] %vm217, %v214
  %224 = vst.msk [vmem:[%s2 + $0x30] sm:$0xff] %vm217, %v215
  %225 = vst.msk [vmem:[%s2 + $0x38] sm:$0xff] %vm217, %v216
  // Predicated region
  $region10: #{tpu_custom_call.1} parent=0 // pred_check
    _
  $region11: #{tpu_custom_call.1} parent=0 // pred_check_branch
    %227 = sbr.rel (0) target = $region13
  $region12: #{tpu_custom_call.1} parent=0 // pred_region
    _
  $region13: #{tpu_custom_call.1} parent=0 // pred_fallthru
    _
  // Predicated region
  $region14: #{tpu_custom_call.1} parent=0 // pred_check
    _
  $region15: #{tpu_custom_call.1} parent=0 // pred_check_branch
    %229 = sbr.rel (0) target = $region17
  $region16: #{tpu_custom_call.1} parent=0 // pred_region
    _
  $region17: #{tpu_custom_call.1} parent=0 // pred_fallthru
    _

</llo_original>
